<compile_context>
chip_gen: v5e
topology: v5e:2x2
jax: 0.10.0
libtpu: 0.0.40
codegen_flags: <defaults>
</compile_context>

<pallas_src>
import functools
import math

import jax
import jax.numpy as jnp
from jax.experimental import pallas as pl
from jax.experimental.pallas import tpu as pltpu

EPSILON = 1e-06


def _round_up(n, m):
    return ((n + m - 1) // m) * m


def _recip(x):
    # EUP approximate reciprocal + one Newton-Raphson refinement on the VPU
    # (which has slack in this EUP-bound kernel) -> ~f32 precision.
    r = pl.reciprocal(x, approx=True)
    return r * (2.0 - x * r)


def sigmoid_flow_kernel(p_ref, x_ref, out_ref, *, hidden_dim, no_logit):
    H = hidden_dim
    # Layout: hidden dim on sublanes (axis 0), flattened B*S on lanes (axis 1).
    a_raw = p_ref[0:H, :].astype(jnp.float32)          # (H, BN)
    b = p_ref[H:2 * H, :].astype(jnp.float32)          # (H, BN)
    pre_w = p_ref[2 * H:3 * H, :].astype(jnp.float32)  # (H, BN)
    x = x_ref[...].astype(jnp.float32)                 # (1, BN)

    # act_a = softplus(a_raw) + eps   (numerically stable softplus)
    abs_a = jnp.abs(a_raw)
    a = jnp.maximum(a_raw, 0.0) + jnp.log1p(jnp.exp(-abs_a)) + EPSILON

    # softmax over the hidden (sublane) axis
    m_w = jnp.max(pre_w, axis=0, keepdims=True)        # (1, BN)
    e_w = jnp.exp(pre_w - m_w)
    s_w = jnp.sum(e_w, axis=0, keepdims=True)
    w = e_w * _recip(s_w)

    # pre_sigm and shared exponential (shifted by min |p| for underflow safety)
    p = a * x + b                                       # (H, BN)
    abs_p = jnp.abs(p)
    m_p = jnp.min(abs_p, axis=0, keepdims=True)         # (1, BN)
    e_shift = jnp.exp(m_p - abs_p)                      # in (0, 1]
    e = e_shift * jnp.exp(-m_p)                         # = exp(-|p|)
    inv_1pe = _recip(1.0 + e)
    sigm = jnp.where(p >= 0.0, inv_1pe, e * inv_1pe)

    x_pre = jnp.sum(w * sigm, axis=0, keepdims=True)    # (1, BN)

    # Collapsed log-Jacobian:
    #   logsumexp_h[log w + log a + log_sig(p) + log_sig(-p)]
    #     = log( sum_h w*a*exp(-|p|)/(1+exp(-|p|))^2 ) - 2*EPS
    #     = log( sum_h w*a*e_shift*inv^2 ) - m_p - 2*EPS
    jac = jnp.sum(w * a * e_shift * (inv_1pe * inv_1pe), axis=0, keepdims=True)
    logj = jnp.log(jac) - m_p - 2.0 * EPSILON           # (1, BN)

    if no_logit:
        xnew = x_pre
        ld = logj
    else:
        x_pre_clipped = x_pre * (1.0 - EPSILON) + EPSILON * 0.5
        lx = jnp.log(x_pre_clipped)
        l1mx = jnp.log(1.0 - x_pre_clipped)
        xnew = lx - l1mx
        ld = logj + math.log(1.0 - EPSILON) - (lx + l1mx)

    # One lane-dense 2-sublane store: row 0 = xnew, row 1 = per-element log-det.
    out_ref[...] = jnp.concatenate([xnew, ld], axis=0).astype(out_ref.dtype)


def sigmoid_flow_forward(params, x, logdet, hidden_dim, no_logit=False,
                         block_n=4096):
    """One SigmoidFlow layer. params: (B, S, 3H), x: (B, S), logdet: (B,)."""
    B, S, threeH = params.shape
    H = hidden_dim
    assert threeH == 3 * H
    N = B * S
    dtype = params.dtype

    # Block / grid sizing: lane blocks multiple of 128, tail waste bounded,
    # and >= 2 blocks whenever N allows so v7x shards across both TensorCores.
    n128 = _round_up(N, 128)
    nb = max(1, -(-n128 // block_n))
    if n128 >= 256:
        nb = max(nb, 2)
    bn = -(-(n128 // 128) // nb) * 128
    n_pad = nb * bn

    # Layout plumbing: single pad + transpose -> one (3H, n_pad) input slab.
    p_t = jnp.pad(params.reshape(N, 3 * H), ((0, n_pad - N), (0, 0))).T
    x_flat = jnp.pad(x.reshape(1, N), ((0, 0), (0, n_pad - N)))

    kernel = functools.partial(sigmoid_flow_kernel, hidden_dim=H,
                               no_logit=no_logit)

    out = pl.pallas_call(
        kernel,
        grid=(nb,),
        in_specs=[
            pl.BlockSpec((3 * H, bn), lambda i: (0, i)),
            pl.BlockSpec((1, bn), lambda i: (0, i)),
        ],
        out_specs=pl.BlockSpec((2, bn), lambda i: (0, i)),
        out_shape=jax.ShapeDtypeStruct((2, n_pad), dtype),
        compiler_params=pltpu.CompilerParams(
            dimension_semantics=("parallel",)),
    )(p_t, x_flat)

    xnew = out[0, :N].reshape(B, S)
    # Tiny per-batch reduction stays in XLA (a lane-segmented sum in-kernel
    # would be XLU-heavy for negligible gain).
    logdet_out = (out[1, :N].reshape(B, S).astype(jnp.float32).sum(axis=1)
                  .astype(dtype) + logdet.astype(dtype))
    return xnew, logdet_out


def deep_sigmoid_flow_forward(params, x, n_layers, hidden_dim, no_logit=False,
                              block_n=4096):
    """DeepSigmoidFlow (dense=False): stack of SigmoidFlow layers."""
    P = 3 * hidden_dim
    assert params.shape[-1] == n_layers * P
    logdet = jnp.zeros((x.shape[0],), dtype=params.dtype)
    for i in range(n_layers):
        layer_no_logit = no_logit if i == n_layers - 1 else False
        x, logdet = sigmoid_flow_forward(
            params[..., i * P:(i + 1) * P], x, logdet, hidden_dim,
            no_logit=layer_no_logit, block_n=block_n)
    return x, logdet


# ---------------- pure-JAX reference (for correctness check) ----------------
def sigmoid_flow_reference(params, x, logdet, hidden_dim, no_logit=False):
    H = hidden_dim
    a = jax.nn.softplus(params[..., :H]) + EPSILON
    b = params[..., H:2 * H]
    pre_w = params[..., 2 * H:]
    w = jax.nn.softmax(pre_w, axis=-1)
    pre_sigm = a * x[..., None] + b
    sigm = jax.nn.sigmoid(pre_sigm)
    x_pre = jnp.sum(w * sigm, axis=-1)
    log_sig = lambda t: -jax.nn.softplus(-t) - EPSILON
    logj = (jax.nn.log_softmax(pre_w, axis=-1) + log_sig(pre_sigm)
            + log_sig(-pre_sigm) + jnp.log(a))
    logj = jax.scipy.special.logsumexp(logj, axis=-1)
    if no_logit:
        return x_pre, jnp.sum(logj, axis=tuple(range(1, logj.ndim))) + logdet
    x_pre_clipped = x_pre * (1 - EPSILON) + EPSILON * 0.5
    xnew = jnp.log(x_pre_clipped) - jnp.log(1 - x_pre_clipped)
    logdet_ = (logj + math.log(1 - EPSILON)
               - (jnp.log(x_pre_clipped) + jnp.log(1 - x_pre_clipped)))
    logdet = jnp.sum(logdet_, axis=tuple(range(1, logdet_.ndim))) + logdet
    return xnew, logdet


def deep_sigmoid_flow_reference(params, x, n_layers, hidden_dim,
                                no_logit=False):
    P = 3 * hidden_dim
    logdet = jnp.zeros((x.shape[0],), dtype=params.dtype)
    for i in range(n_layers):
        ln = no_logit if i == n_layers - 1 else False
        x, logdet = sigmoid_flow_reference(params[..., i * P:(i + 1) * P], x,
                                           logdet, hidden_dim, no_logit=ln)
    return x, logdet


if __name__ == "__main__":
    B, S, H, L = 2, 8, 16, 2  # batch, sequence, hidden_dim, n_layers

    key = jax.random.PRNGKey(0)
    k_params, k_x, k_logdet = jax.random.split(key, 3)
    params = jax.random.normal(k_params, (B, S, L * 3 * H), dtype=jnp.float32)
    x = jax.random.normal(k_x, (B, S), dtype=jnp.float32)
    logdet0 = jax.random.normal(k_logdet, (B,), dtype=jnp.float32)

    p0 = params[..., :3 * H]

    # Single SigmoidFlow layer, logit path (no_logit=False)
    xnew, logdet = sigmoid_flow_forward(p0, x, logdet0, hidden_dim=H,
                                        no_logit=False)
    jax.block_until_ready((xnew, logdet))
    xnew_ref, logdet_ref = sigmoid_flow_reference(p0, x, logdet0,
                                                  hidden_dim=H, no_logit=False)
    assert jnp.allclose(xnew, xnew_ref, atol=3e-4, rtol=1e-4), "xnew mismatch"
    assert jnp.allclose(logdet, logdet_ref, atol=1e-3, rtol=1e-4), "logdet mismatch"

    # Single layer, (0, 1)-output path (no_logit=True)
    xn2, ld2 = sigmoid_flow_forward(p0, x, logdet0, hidden_dim=H,
                                    no_logit=True)
    jax.block_until_ready((xn2, ld2))
    xn2_ref, ld2_ref = sigmoid_flow_reference(p0, x, logdet0, hidden_dim=H,
                                              no_logit=True)
    assert jnp.allclose(xn2, xn2_ref, atol=3e-4, rtol=1e-4), "xnew mismatch (no_logit)"
    assert jnp.allclose(ld2, ld2_ref, atol=1e-3, rtol=1e-4), "logdet mismatch (no_logit)"

    # Full DeepSigmoidFlow (dense=False), 2 layers
    xd, ldd = deep_sigmoid_flow_forward(params, x, n_layers=L, hidden_dim=H,
                                        no_logit=False)
    jax.block_until_ready((xd, ldd))
    xd_ref, ldd_ref = deep_sigmoid_flow_reference(params, x, n_layers=L,
                                                  hidden_dim=H, no_logit=False)
    assert jnp.allclose(xd, xd_ref, atol=5e-4, rtol=1e-4), "deep xnew mismatch"
    assert jnp.allclose(ldd, ldd_ref, atol=2e-3, rtol=1e-4), "deep logdet mismatch"

    print("KERNEL_OK")
</pallas_src>

<mosaic_0001>
module attributes {stable_mosaic.version = 11 : i64} {
  func.func @sigmoid_flow_kernel(%arg0: i32, %arg1: memref<48x128xf32, #tpu.memory_space<vmem>>, %arg2: memref<1x128xf32, #tpu.memory_space<vmem>>, %arg3: memref<2x128xf32, #tpu.memory_space<vmem>>) attributes {dimension_semantics = [#tpu.dimension_semantics<parallel>], iteration_bounds = array<i64: 1>, scalar_prefetch = 0 : i64, scratch_operands = 0 : i64, tpu.core_type = #tpu.core_type<tc>, window_params = [{transform_indices = @transform_0, window_bounds = array<i64: 48, 128>}, {transform_indices = @transform_1, window_bounds = array<i64: 1, 128>}, {transform_indices = @transform_2, window_bounds = array<i64: 2, 128>}]} {
    %c0 = arith.constant 0 : index
    %c0_0 = arith.constant 0 : index
    %0 = vector.load %arg1[%c0, %c0_0] : memref<48x128xf32, #tpu.memory_space<vmem>>, vector<16x128xf32>
    %c16 = arith.constant 16 : index
    %c0_1 = arith.constant 0 : index
    %1 = vector.load %arg1[%c16, %c0_1] : memref<48x128xf32, #tpu.memory_space<vmem>>, vector<16x128xf32>
    %c32 = arith.constant 32 : index
    %c0_2 = arith.constant 0 : index
    %2 = vector.load %arg1[%c32, %c0_2] : memref<48x128xf32, #tpu.memory_space<vmem>>, vector<16x128xf32>
    %c0_3 = arith.constant 0 : index
    %c0_4 = arith.constant 0 : index
    %3 = vector.load %arg2[%c0_3, %c0_4] : memref<1x128xf32, #tpu.memory_space<vmem>>, vector<1x128xf32>
    %4 = math.absf %0 : vector<16x128xf32>
    %cst = arith.constant 0.000000e+00 : f32
    %5 = vector.broadcast %cst : f32 to vector<16x128xf32>
    %6 = arith.maximumf %0, %5 : vector<16x128xf32>
    %cst_5 = arith.constant 0.000000e+00 : f32
    %7 = vector.broadcast %cst_5 : f32 to vector<16x128xf32>
    %8 = arith.subf %7, %4 : vector<16x128xf32>
    %9 = math.exp %8 : vector<16x128xf32>
    %10 = math.log1p %9 : vector<16x128xf32>
    %11 = arith.addf %6, %10 : vector<16x128xf32>
    %cst_6 = arith.constant 9.99999997E-7 : f32
    %12 = vector.broadcast %cst_6 : f32 to vector<16x128xf32>
    %13 = arith.addf %11, %12 : vector<16x128xf32>
    %cst_7 = arith.constant dense<0xFF800000> : vector<128xf32>
    %14 = vector.multi_reduction <maximumf>, %2, %cst_7 [0] : vector<16x128xf32> to vector<128xf32>
    %15 = vector.shape_cast %14 : vector<128xf32> to vector<1x128xf32>
    %16 = vector.broadcast %15 : vector<1x128xf32> to vector<16x128xf32>
    %17 = arith.subf %2, %16 : vector<16x128xf32>
    %18 = math.exp %17 : vector<16x128xf32>
    %cst_8 = arith.constant dense<0.000000e+00> : vector<128xf32>
    %19 = vector.multi_reduction <add>, %18, %cst_8 [0] : vector<16x128xf32> to vector<128xf32>
    %20 = vector.shape_cast %19 : vector<128xf32> to vector<1x128xf32>
    %21 = tpu.reciprocal %20 {approx = true} : vector<1x128xf32> -> vector<1x128xf32>
    %22 = arith.mulf %20, %21 : vector<1x128xf32>
    %cst_9 = arith.constant 2.000000e+00 : f32
    %23 = vector.broadcast %cst_9 : f32 to vector<1x128xf32>
    %24 = arith.subf %23, %22 : vector<1x128xf32>
    %25 = arith.mulf %21, %24 : vector<1x128xf32>
    %26 = vector.broadcast %25 : vector<1x128xf32> to vector<16x128xf32>
    %27 = arith.mulf %18, %26 : vector<16x128xf32>
    %28 = vector.broadcast %3 : vector<1x128xf32> to vector<16x128xf32>
    %29 = arith.mulf %13, %28 : vector<16x128xf32>
    %30 = arith.addf %29, %1 : vector<16x128xf32>
    %31 = math.absf %30 : vector<16x128xf32>
    %cst_10 = arith.constant dense<0x7F800000> : vector<128xf32>
    %32 = vector.multi_reduction <minimumf>, %31, %cst_10 [0] : vector<16x128xf32> to vector<128xf32>
    %33 = vector.shape_cast %32 : vector<128xf32> to vector<1x128xf32>
    %34 = vector.broadcast %33 : vector<1x128xf32> to vector<16x128xf32>
    %35 = arith.subf %34, %31 : vector<16x128xf32>
    %36 = math.exp %35 : vector<16x128xf32>
    %cst_11 = arith.constant 0.000000e+00 : f32
    %37 = vector.broadcast %cst_11 : f32 to vector<1x128xf32>
    %38 = arith.subf %37, %33 : vector<1x128xf32>
    %39 = math.exp %38 : vector<1x128xf32>
    %40 = vector.broadcast %39 : vector<1x128xf32> to vector<16x128xf32>
    %41 = arith.mulf %36, %40 : vector<16x128xf32>
    %cst_12 = arith.constant 1.000000e+00 : f32
    %42 = vector.broadcast %cst_12 : f32 to vector<16x128xf32>
    %43 = arith.addf %42, %41 : vector<16x128xf32>
    %44 = tpu.reciprocal %43 {approx = true} : vector<16x128xf32> -> vector<16x128xf32>
    %45 = arith.mulf %43, %44 : vector<16x128xf32>
    %cst_13 = arith.constant 2.000000e+00 : f32
    %46 = vector.broadcast %cst_13 : f32 to vector<16x128xf32>
    %47 = arith.subf %46, %45 : vector<16x128xf32>
    %48 = arith.mulf %44, %47 : vector<16x128xf32>
    %cst_14 = arith.constant 0.000000e+00 : f32
    %49 = vector.broadcast %cst_14 : f32 to vector<16x128xf32>
    %50 = arith.cmpf oge, %30, %49 : vector<16x128xf32>
    %51 = arith.mulf %41, %48 : vector<16x128xf32>
    %52 = arith.select %50, %48, %51 : vector<16x128xi1>, vector<16x128xf32>
    %53 = arith.mulf %27, %52 : vector<16x128xf32>
    %cst_15 = arith.constant dense<0.000000e+00> : vector<128xf32>
    %54 = vector.multi_reduction <add>, %53, %cst_15 [0] : vector<16x128xf32> to vector<128xf32>
    %55 = vector.shape_cast %54 : vector<128xf32> to vector<1x128xf32>
    %56 = arith.mulf %27, %13 : vector<16x128xf32>
    %57 = arith.mulf %56, %36 : vector<16x128xf32>
    %58 = arith.mulf %48, %48 : vector<16x128xf32>
    %59 = arith.mulf %57, %58 : vector<16x128xf32>
    %cst_16 = arith.constant dense<0.000000e+00> : vector<128xf32>
    %60 = vector.multi_reduction <add>, %59, %cst_16 [0] : vector<16x128xf32> to vector<128xf32>
    %61 = vector.shape_cast %60 : vector<128xf32> to vector<1x128xf32>
    %62 = math.log %61 : vector<1x128xf32>
    %63 = arith.subf %62, %33 : vector<1x128xf32>
    %cst_17 = arith.constant 2.000000e-06 : f32
    %64 = vector.broadcast %cst_17 : f32 to vector<1x128xf32>
    %65 = arith.subf %63, %64 : vector<1x128xf32>
    %cst_18 = arith.constant 0.999998986 : f32
    %66 = vector.broadcast %cst_18 : f32 to vector<1x128xf32>
    %67 = arith.mulf %55, %66 : vector<1x128xf32>
    %cst_19 = arith.constant 5.000000e-07 : f32
    %68 = vector.broadcast %cst_19 : f32 to vector<1x128xf32>
    %69 = arith.addf %67, %68 : vector<1x128xf32>
    %70 = math.log %69 : vector<1x128xf32>
    %cst_20 = arith.constant 1.000000e+00 : f32
    %71 = vector.broadcast %cst_20 : f32 to vector<1x128xf32>
    %72 = arith.subf %71, %69 : vector<1x128xf32>
    %73 = math.log %72 : vector<1x128xf32>
    %74 = arith.subf %70, %73 : vector<1x128xf32>
    %cst_21 = arith.constant -1.00000045E-6 : f32
    %75 = vector.broadcast %cst_21 : f32 to vector<1x128xf32>
    %76 = arith.addf %65, %75 : vector<1x128xf32>
    %77 = arith.addf %70, %73 : vector<1x128xf32>
    %78 = arith.subf %76, %77 : vector<1x128xf32>
    %79 = tpu.concatenate %74, %78 in 0 : vector<1x128xf32>, vector<1x128xf32> -> vector<2x128xf32>
    %c0_22 = arith.constant 0 : index
    %c0_23 = arith.constant 0 : index
    %80 = vector.load %arg3[%c0_22, %c0_23] : memref<2x128xf32, #tpu.memory_space<vmem>>, vector<2x128xf32>
    tpu.vector_store %arg3[%c0_22, %c0_23], %79 {strides = array<i32>} : memref<2x128xf32, #tpu.memory_space<vmem>>, vector<2x128xf32>,
    return
  }
  func.func @transform_0(%arg0: i32) -> (i32, i32) {
    %c0_i32 = arith.constant 0 : i32
    %c0_i32_0 = arith.constant 0 : i32
    return %c0_i32, %arg0 : i32, i32
  }
  func.func @transform_1(%arg0: i32) -> (i32, i32) {
    %c0_i32 = arith.constant 0 : i32
    %c0_i32_0 = arith.constant 0 : i32
    return %c0_i32, %arg0 : i32, i32
  }
  func.func @transform_2(%arg0: i32) -> (i32, i32) {
    %c0_i32 = arith.constant 0 : i32
    %c0_i32_0 = arith.constant 0 : i32
    return %c0_i32, %arg0 : i32, i32
  }
}

</mosaic_0001>

<llo_original>
// kernel: tpu_custom_call.1
$region0: #{tpu_custom_call.1}
  #allocation0 [shape = 'u32[]', space=smem, size = 0x4, offset = 0x4, fixed_abs, tag = 'smem constant byte address 0x4 - core index']
  #allocation1 [shape = 'u32[72,128]{1,0:T(1,128)}', space=vmem, size = 0x9000, scoped, tag = 'internal scratch']
  %s0 = inlined_call_operand.hbm [shape: f32[48,128], index: 0, kind: input, shape index: {}]
  %s1 = inlined_call_operand.hbm [shape: f32[1,128], index: 1, kind: input, shape index: {}]
  %s2 = inlined_call_operand.hbm [shape: f32[2,128], index: 2, kind: output, shape index: {}]
  %s3 = sld [smem:[#allocation0]]
  $region26: #{tpu_custom_call.1} parent=0
    _
  %s5 = ssub.s32 1, %s3
  %s6 = scalar_select 0, %s5, %s3
  $region1: #{tpu_custom_call.1} parent=0
    #allocation2 [shape = 'u8[24576]{0}', space=vmem, size = 0x6000, scoped, tag = 'input window, operand 0, single buffered']
    #allocation3 [shape = 's32[1]{0}', space=sflag, size = 0x4, scoped, tag = 'scoped memory for tpu_custom_call.1']
    #allocation4 [shape = 's32[1]{0}', space=sflag, size = 0x4, scoped, tag = 'scoped memory for tpu_custom_call.1']
    #allocation5 [shape = 'u8[512]{0}', space=vmem, size = 0x400, scoped, tag = 'input window, operand 1, single buffered']
    #allocation6 [shape = 's32[1]{0}', space=sflag, size = 0x4, scoped, tag = 'scoped memory for tpu_custom_call.1']
    #allocation7 [shape = 'u8[1024]{0}', space=vmem, size = 0x400, scoped, tag = 'output window, operand 0, single buffered']
    %7 = vsyncpa [#allocation3], 0
    %8 = vsyncpa [#allocation6], 0
    %9 = vsyncpa [#allocation4], 0
    // Predicated region
    $region2: #{tpu_custom_call.1} parent=1 // pred_check
      _
    $region3: #{tpu_custom_call.1} parent=1 // pred_check_branch
      %11 = sbr.rel (0) target = $region5
    $region4: #{tpu_custom_call.1} parent=1 // pred_region
      %13 = vsyncadd [#allocation3], 0
      %s14 = sshll.u32 %s0, 4
      %s15 = int_to_ptr.hbm [resolvable:$true] %s14
      %s16 = sshll.u32 [#allocation2], 4
      %s17 = int_to_ptr.vmem [resolvable:$true] %s16
      %22 = dma.hbm_to_vmem [thread:$0]  %s15, 768, %s17, [#allocation3], 128, 128, 8
    $region5: #{tpu_custom_call.1} parent=1 // pred_fallthru
      _
    // Predicated region
    $region6: #{tpu_custom_call.1} parent=1 // pred_check
      _
    $region7: #{tpu_custom_call.1} parent=1 // pred_check_branch
      %24 = sbr.rel (0) target = $region9
    $region8: #{tpu_custom_call.1} parent=1 // pred_region
      %26 = vsyncadd [#allocation6], 0
      %s28 = sshll.u32 %s1, 4
      %s29 = int_to_ptr.hbm [resolvable:$true] %s28
      %s30 = sshll.u32 [#allocation5], 4
      %s31 = int_to_ptr.vmem [resolvable:$true] %s30
      %33 = dma.hbm_to_vmem [thread:$0]  %s29, 16, %s31, [#allocation6]
    $region9: #{tpu_custom_call.1} parent=1 // pred_fallthru
      _
    // Predicated region
    $region10: #{tpu_custom_call.1} parent=1 // pred_check
      _
    $region11: #{tpu_custom_call.1} parent=1 // pred_check_branch
      %35 = sbr.rel (0) target = $region13
    $region12: #{tpu_custom_call.1} parent=1 // pred_region
      %37 = dma.done [#allocation3], 768
    $region13: #{tpu_custom_call.1} parent=1 // pred_fallthru
      _
    // Predicated region
    $region14: #{tpu_custom_call.1} parent=1 // pred_check
      _
    $region15: #{tpu_custom_call.1} parent=1 // pred_check_branch
      %39 = sbr.rel (0) target = $region17
    $region16: #{tpu_custom_call.1} parent=1 // pred_region
      %41 = dma.done [#allocation6], 16
    $region17: #{tpu_custom_call.1} parent=1 // pred_fallthru
      _
    %v42 = vld [vmem:[#allocation2] sm:$0xff]
    %v43 = vld [vmem:[#allocation2 + $0x8] sm:$0xff]
    %v44 = vld [vmem:[#allocation2 + $0x10] sm:$0xff]
    %v45 = vld [vmem:[#allocation2 + $0x18] sm:$0xff]
    %v46 = vld [vmem:[#allocation2 + $0x20] sm:$0xff]
    %v47 = vld [vmem:[#allocation2 + $0x28] sm:$0xff]
    %v48 = vld [vmem:[#allocation5] sm:$0x1]
    %v49 = vand.u32 2147483647, %v42
    %v50 = vand.u32 2147483647, %v43
    %v51 = vmax.f32 %v42, 0.0
    %v52 = vmax.f32 %v43, 0.0
    %v53 = vsub.f32 0.0, %v49
    %v54 = vsub.f32 0.0, %v50
    %v55 = vmul.f32 %v53, 1.442695
    %v56 = vpow.pop %v55
    %v57 = vmul.f32 %v54, 1.442695
    %v58 = vpow.pop %v57
    %v59 = vadd.f32 %v56, 1.0
    %v60 = vlog2.pop %v59
    %v61 = vmul.f32 %v60, 0.6931472
    %v62 = vmul.f32 -0.5, %v56
    %v63 = vadd.f32 %v62, 1.0
    %v64 = vmul.f32 %v63, %v56
    %v65 = vand.u32 2147483647, %v56
    %vm66 = vcmp.lt.f32.partialorder %v65, 0.0004427343
    %v67 = vsel %vm66, %v64, %v61
    %v68 = vadd.f32 %v58, 1.0
    %v69 = vlog2.pop %v68
    %v70 = vmul.f32 %v69, 0.6931472
    %v71 = vmul.f32 -0.5, %v58
    %v72 = vadd.f32 %v71, 1.0
    %v73 = vmul.f32 %v72, %v58
    %v74 = vand.u32 2147483647, %v58
    %vm75 = vcmp.lt.f32.partialorder %v74, 0.0004427343
    %v76 = vsel %vm75, %v73, %v70
    %v77 = vadd.f32 %v51, %v67
    %v78 = vadd.f32 %v52, %v76
    %v79 = vadd.f32 %v77, 1e-06
    %v80 = vadd.f32 %v78, 1e-06
    %v81 = vmax.f32 %v46, %v47
    %v82 = vrot.slane %v81, 4
    %v83 = vmax.f32 %v81, %v82
    %v84 = vrot.slane %v83, 2
    %v85 = vmax.f32 %v83, %v84
    %v86 = vrot.slane %v85, 1
    %v87 = vmax.f32 %v85, %v86
    %v88 = vsub.f32 %v46, %v87
    %v89 = vsub.f32 %v47, %v87
    %v90 = vmul.f32 %v88, 1.442695
    %v91 = vpow.pop %v90
    %v92 = vmul.f32 %v89, 1.442695
    %v93 = vpow.pop %v92
    %v94 = vadd.f32 %v91, %v93
    %v95 = vrot.slane %v94, 4
    %v96 = vadd.f32 %v94, %v95
    %v97 = vrot.slane %v96, 2
    %v98 = vadd.f32 %v96, %v97
    %v99 = vrot.slane %v98, 1
    %v100 = vadd.f32 %v98, %v99
    %v101 = vrcp.pop %v100
    %v102 = vmul.f32 %v100, %v101
    %v103 = vsub.f32 2.0, %v102
    %v104 = vmul.f32 %v101, %v103
    %v105 = vmul.f32 %v91, %v104
    %v106 = vmul.f32 %v93, %v104
    %v108 = vperm.slane %v48, 0
    %v110 = vmul.f32 %v79, %v108
    %v111 = vmul.f32 %v80, %v108
    %v112 = vadd.f32 %v110, %v44
    %v113 = vadd.f32 %v111, %v45
    %v114 = vand.u32 2147483647, %v112
    %v115 = vand.u32 2147483647, %v113
    %v116 = vmin.f32 %v114, %v115
    %v117 = vrot.slane %v116, 4
    %v118 = vmin.f32 %v116, %v117
    %v119 = vrot.slane %v118, 2
    %v120 = vmin.f32 %v118, %v119
    %v121 = vrot.slane %v120, 1
    %v122 = vmin.f32 %v120, %v121
    %v123 = vsub.f32 %v122, %v114
    %v124 = vsub.f32 %v122, %v115
    %v125 = vmul.f32 %v123, 1.442695
    %v126 = vpow.pop %v125
    %v127 = vmul.f32 %v124, 1.442695
    %v128 = vpow.pop %v127
    %v129 = vsub.f32 0.0, %v122
    %v130 = vmul.f32 %v129, 1.442695
    %v131 = vpow.pop %v130
    %v132 = vmul.f32 %v126, %v131
    %v133 = vmul.f32 %v128, %v131
    %v134 = vadd.f32 %v132, 1.0
    %v135 = vadd.f32 %v133, 1.0
    %v136 = vrcp.pop %v134
    %v137 = vrcp.pop %v135
    %v138 = vmul.f32 %v134, %v136
    %v139 = vmul.f32 %v135, %v137
    %v140 = vsub.f32 2.0, %v138
    %v141 = vsub.f32 2.0, %v139
    %v142 = vmul.f32 %v136, %v140
    %v143 = vmul.f32 %v137, %v141
    %vm144 = vcmp.ge.f32.partialorder %v112, 0.0
    %vm145 = vcmp.ge.f32.partialorder %v113, 0.0
    %v146 = vmul.f32 %v132, %v142
    %v147 = vmul.f32 %v133, %v143
    %v148 = vsel %vm144, %v142, %v146
    %v149 = vsel %vm145, %v143, %v147
    %v150 = vmul.f32 %v105, %v148
    %v151 = vmul.f32 %v106, %v149
    %v152 = vadd.f32 %v150, %v151
    %v153 = vrot.slane %v152, 4
    %v154 = vadd.f32 %v152, %v153
    %v155 = vrot.slane %v154, 2
    %v156 = vadd.f32 %v154, %v155
    %v157 = vrot.slane %v156, 1
    %v158 = vadd.f32 %v156, %v157
    %v159 = vmul.f32 %v105, %v79
    %v160 = vmul.f32 %v106, %v80
    %v161 = vmul.f32 %v159, %v126
    %v162 = vmul.f32 %v160, %v128
    %v163 = vmul.f32 %v142, %v142
    %v164 = vmul.f32 %v143, %v143
    %v165 = vmul.f32 %v161, %v163
    %v166 = vmul.f32 %v162, %v164
    %v167 = vadd.f32 %v165, %v166
    %v168 = vrot.slane %v167, 4
    %v169 = vadd.f32 %v167, %v168
    %v170 = vrot.slane %v169, 2
    %v171 = vadd.f32 %v169, %v170
    %v172 = vrot.slane %v171, 1
    %v173 = vadd.f32 %v171, %v172
    %v174 = vlog2.pop %v173
    %v175 = vmul.f32 %v174, 0.6931472
    %v176 = vsub.f32 %v175, %v122
    %v177 = vsub.f32 %v176, 2e-06
    %v178 = vmul.f32 %v158, 0.999999
    %v179 = vadd.f32 %v178, 5e-07
    %v180 = vlog2.pop %v179
    %v181 = vmul.f32 %v180, 0.6931472
    %v182 = vsub.f32 1.0, %v179
    %v183 = vlog2.pop %v182
    %v184 = vmul.f32 %v183, 0.6931472
    %v185 = vsub.f32 %v181, %v184
    %v186 = vadd.f32 %v177, -1.0000005e-06
    %v187 = vadd.f32 %v181, %v184
    %v188 = vsub.f32 %v186, %v187
    %vm189 = vcmask 1040384
    %v190 = vsel %vm189, %v185, %v188
    %191 = vst [vmem:[#allocation7] sm:$0x3] %v190
    // Predicated region
    $region18: #{tpu_custom_call.1} parent=1 // pred_check
      _
    $region19: #{tpu_custom_call.1} parent=1 // pred_check_branch
      %193 = sbr.rel (0) target = $region21
    $region20: #{tpu_custom_call.1} parent=1 // pred_region
      %195 = vsyncadd [#allocation4], 0
      %s197 = sshll.u32 [#allocation7], 4
      %s198 = int_to_ptr.vmem [resolvable:$true] %s197
      %s199 = sshll.u32 %s2, 4
      %s200 = int_to_ptr.hbm [resolvable:$true] %s199
      %202 = dma.vmem_to_hbm [thread:$0]  %s198, 32, %s200, [#allocation4]
    $region21: #{tpu_custom_call.1} parent=1 // pred_fallthru
      _
    // Predicated region
    $region22: #{tpu_custom_call.1} parent=1 // pred_check
      _
    $region23: #{tpu_custom_call.1} parent=1 // pred_check_branch
      %204 = sbr.rel (0) target = $region25
    $region24: #{tpu_custom_call.1} parent=1 // pred_region
      %206 = dma.done [#allocation4], 32
    $region25: #{tpu_custom_call.1} parent=1 // pred_fallthru
      _
    %207 = vsyncpa [#allocation3], 1
    %208 = vsyncpa [#allocation6], 1
    %209 = vsyncpa [#allocation4], 1

</llo_original>
